<compile_context>
chip_gen: v5e
topology: v5e:2x2
jax: 0.10.0
libtpu: 0.0.40
codegen_flags: <defaults>
</compile_context>

<pallas_src>
import jax
import jax.numpy as jnp
from jax.experimental import pallas as pl
from jax.experimental.pallas import tpu as pltpu


def _round_up(a, b):
    return ((a + b - 1) // b) * b


def graphstate_kernel(x_ref, w13_ref, b13_ref, w2_ref, b2_ref, o_ref):
    s = w2_ref.shape[1]
    # In-kernel bf16 cast of the f32 input rows (hides under the MXU matmul).
    x = x_ref[...].astype(jnp.bfloat16)
    # One fused MXU matmul for both branches: (tm, D_in) @ (D_in, 2S) -> f32 (tm, 2S)
    y = jnp.dot(x, w13_ref[...], preferred_element_type=jnp.float32)
    t = jnp.tanh(y + b13_ref[...])          # f32 tanh on the EUP (v5e has no bf16 EUP)
    h = t[:, :s]                            # attention hidden   (tm, S)
    proj = t[:, s:]                         # vertex contributor (tm, S)
    # Per-row attention scalar: VPU multiply + XLU lane reduction (no (S,1) mat-vec).
    att = jnp.sum(h * w2_ref[...], axis=-1, keepdims=True) + b2_ref[0]      # (tm, 1)
    # sum(att * proj, -1) == att * rowsum(proj): skips the (tm, S) elementwise multiply
    o_ref[...] = (att * jnp.sum(proj, axis=-1, keepdims=True)).astype(o_ref.dtype)


def graph_state_forward(join_state, params, *, tm=2048):
    """join_state: (B, N, state_dim + annotation_dim) f32.  Returns (B, N) f32."""
    B, N, D_in = join_state.shape
    w1, b1, w2, b2, w3, b3 = params
    S = w1.shape[1]
    M = B * N

    # Fused weights / biases (tiny, host-side / constant-folded under jit).
    w13 = jnp.concatenate([w1, w3], axis=1).astype(jnp.bfloat16)         # (D_in, 2S)
    b13 = jnp.concatenate([b1, b3]).reshape(1, 2 * S).astype(jnp.float32)
    w2_row = w2.reshape(1, S).astype(jnp.float32)
    b2_s = b2.reshape(1).astype(jnp.float32)                             # SMEM scalar

    # Row tile: multiple of 8 (f32 sublane), capped at tm; partial last block is fine.
    tm_eff = max(8, min(_round_up(tm, 8), _round_up(M, 8)))
    grid_m = pl.cdiv(M, tm_eff)

    # Free view: no cast, no pad, no extra HBM pass.
    x2d = join_state.reshape(M, D_in)

    out = pl.pallas_call(
        graphstate_kernel,
        out_shape=jax.ShapeDtypeStruct((M, 1), jnp.float32),
        grid_spec=pltpu.PrefetchScalarGridSpec(
            num_scalar_prefetch=0,
            grid=(grid_m,),
            in_specs=[
                pl.BlockSpec((tm_eff, D_in), lambda i: (i, 0)),      # join_state rows (f32)
                pl.BlockSpec((D_in, 2 * S), lambda i: (0, 0)),       # fused W1|W3 (bf16)
                pl.BlockSpec((1, 2 * S), lambda i: (0, 0)),          # fused b1|b3
                pl.BlockSpec((1, S), lambda i: (0, 0)),              # attention W2 row
                pl.BlockSpec(memory_space=pltpu.MemorySpace.SMEM),   # b2 scalar
            ],
            out_specs=pl.BlockSpec((tm_eff, 1), lambda i: (i, 0)),
        ),
        compiler_params=pltpu.CompilerParams(
            dimension_semantics=("parallel",),
        ),
    )(x2d, w13, b13, w2_row, b2_s)

    return out.reshape(B, N)


def reference_forward(join_state, params, *, x_dtype=jnp.float32):
    """Pure-JAX reference matching the PyTorch module.  x_dtype=bfloat16 mirrors the
    kernel's in-kernel input/weight quantization for a tight numerical comparison."""
    w1, b1, w2, b2, w3, b3 = params
    x = join_state.astype(x_dtype).astype(jnp.float32)
    w1q = w1.astype(x_dtype).astype(jnp.float32)
    w3q = w3.astype(x_dtype).astype(jnp.float32)
    h = jnp.tanh(x @ w1q + b1)
    att = h @ w2 + b2                          # (B, N, 1)
    proj = jnp.tanh(x @ w3q + b3)              # (B, N, S)
    return jnp.sum(att * proj, axis=2)         # (B, N)


def init_params(key, state_dim, annotation_dim):
    d_in = state_dim + annotation_dim
    ks = jax.random.split(key, 6)
    scale = 0.1
    w1 = scale * jax.random.normal(ks[0], (d_in, state_dim), jnp.float32)
    b1 = scale * jax.random.normal(ks[1], (state_dim,), jnp.float32)
    w2 = scale * jax.random.normal(ks[2], (state_dim, 1), jnp.float32)
    b2 = scale * jax.random.normal(ks[3], (1,), jnp.float32)
    w3 = scale * jax.random.normal(ks[4], (d_in, state_dim), jnp.float32)
    b3 = scale * jax.random.normal(ks[5], (state_dim,), jnp.float32)
    return (w1, b1, w2, b2, w3, b3)


if __name__ == "__main__":
    # Small config: state_dim=32, annotation_dim=16, batch=2, n_nodes=8
    state_dim, annotation_dim = 32, 16
    B, N = 2, 8
    d_in = state_dim + annotation_dim

    key = jax.random.PRNGKey(0)
    k_x, k_p = jax.random.split(key)
    join_state = jax.random.normal(k_x, (B, N, d_in), jnp.float32)
    params = init_params(k_p, state_dim, annotation_dim)

    fwd = jax.jit(graph_state_forward)
    out = jax.block_until_ready(fwd(join_state, params))
    assert out.shape == (B, N)

    # Tight check vs a reference using the same bf16 input/weight quantization.
    ref_q = reference_forward(join_state, params, x_dtype=jnp.bfloat16)
    assert jnp.allclose(out, ref_q, atol=3e-2, rtol=3e-2), float(
        jnp.max(jnp.abs(out - ref_q)))

    # Looser check vs the exact f32 module semantics (bf16 quantization noise only).
    ref = reference_forward(join_state, params)
    assert jnp.allclose(out, ref, atol=1e-1, rtol=1e-1), float(
        jnp.max(jnp.abs(out - ref)))

    print("KERNEL_OK")
</pallas_src>

<mosaic_0001>
module attributes {stable_mosaic.version = 11 : i64} {
  func.func @graphstate_kernel(%arg0: i32, %arg1: memref<16x48xf32, #tpu.memory_space<vmem>>, %arg2: memref<48x64xbf16, #tpu.memory_space<vmem>>, %arg3: memref<1x64xf32, #tpu.memory_space<vmem>>, %arg4: memref<1x32xf32, #tpu.memory_space<vmem>>, %arg5: memref<1xf32, #tpu.memory_space<smem>>, %arg6: memref<16x1xf32, #tpu.memory_space<vmem>>) attributes {dimension_semantics = [#tpu.dimension_semantics<parallel>], iteration_bounds = array<i64: 1>, scalar_prefetch = 0 : i64, scratch_operands = 0 : i64, tpu.core_type = #tpu.core_type<tc>, window_params = [{transform_indices = @transform_0, window_bounds = array<i64: 16, 48>}, {pipeline_mode = #tpu.pipeline_mode<synchronous>, transform_indices = @transform_1, window_bounds = array<i64: 48, 64>}, {pipeline_mode = #tpu.pipeline_mode<synchronous>, transform_indices = @transform_2, window_bounds = array<i64: 1, 64>}, {pipeline_mode = #tpu.pipeline_mode<synchronous>, transform_indices = @transform_3, window_bounds = array<i64: 1, 32>}, {transform_indices = @transform_4, window_bounds = array<i64: 1>}, {transform_indices = @transform_5, window_bounds = array<i64: 16, 1>}]} {
    %c0 = arith.constant 0 : index
    %c0_0 = arith.constant 0 : index
    %0 = vector.load %arg1[%c0, %c0_0] : memref<16x48xf32, #tpu.memory_space<vmem>>, vector<16x48xf32>
    %1 = arith.truncf %0 : vector<16x48xf32> to vector<16x48xbf16>
    %c0_1 = arith.constant 0 : index
    %c0_2 = arith.constant 0 : index
    %2 = vector.load %arg2[%c0_1, %c0_2] : memref<48x64xbf16, #tpu.memory_space<vmem>>, vector<48x64xbf16>
    %cst = arith.constant dense<0.000000e+00> : vector<16x64xf32>
    %3 = tpu.matmul %1, %2, %cst {dimension_numbers = #tpu.dot_dimension_numbers<[1], [0], [0], [1], [0, 0, 1, 1], [], []>} : vector<16x48xbf16>, vector<48x64xbf16>, vector<16x64xf32> -> vector<16x64xf32>
    %c0_3 = arith.constant 0 : index
    %c0_4 = arith.constant 0 : index
    %4 = vector.load %arg3[%c0_3, %c0_4] : memref<1x64xf32, #tpu.memory_space<vmem>>, vector<1x64xf32>
    %5 = vector.broadcast %4 : vector<1x64xf32> to vector<16x64xf32>
    %6 = arith.addf %3, %5 : vector<16x64xf32>
    %7 = math.tanh %6 : vector<16x64xf32>
    %8 = vector.extract_strided_slice %7 {offsets = [0, 0], sizes = [16, 32], strides = [1, 1]} : vector<16x64xf32> to vector<16x32xf32>
    %9 = vector.extract_strided_slice %7 {offsets = [0, 32], sizes = [16, 32], strides = [1, 1]} : vector<16x64xf32> to vector<16x32xf32>
    %c0_5 = arith.constant 0 : index
    %c0_6 = arith.constant 0 : index
    %10 = vector.load %arg4[%c0_5, %c0_6] : memref<1x32xf32, #tpu.memory_space<vmem>>, vector<1x32xf32>
    %11 = vector.broadcast %10 : vector<1x32xf32> to vector<16x32xf32>
    %12 = arith.mulf %8, %11 : vector<16x32xf32>
    %cst_7 = arith.constant dense<0.000000e+00> : vector<16xf32>
    %13 = vector.multi_reduction <add>, %12, %cst_7 [1] : vector<16x32xf32> to vector<16xf32>
    %14 = vector.shape_cast %13 : vector<16xf32> to vector<16x1xf32>
    %c0_8 = arith.constant 0 : index
    %15 = memref.load %arg5[%c0_8] : memref<1xf32, #tpu.memory_space<smem>>
    %16 = vector.broadcast %15 : f32 to vector<16x1xf32>
    %17 = arith.addf %14, %16 : vector<16x1xf32>
    %cst_9 = arith.constant dense<0.000000e+00> : vector<16xf32>
    %18 = vector.multi_reduction <add>, %9, %cst_9 [1] : vector<16x32xf32> to vector<16xf32>
    %19 = vector.shape_cast %18 : vector<16xf32> to vector<16x1xf32>
    %20 = arith.mulf %17, %19 : vector<16x1xf32>
    %c0_10 = arith.constant 0 : index
    %c0_11 = arith.constant 0 : index
    %21 = vector.load %arg6[%c0_10, %c0_11] : memref<16x1xf32, #tpu.memory_space<vmem>>, vector<16x1xf32>
    tpu.vector_store %arg6[%c0_10, %c0_11], %20 {strides = array<i32>} : memref<16x1xf32, #tpu.memory_space<vmem>>, vector<16x1xf32>,
    return
  }
  func.func @transform_0(%arg0: i32) -> (i32, i32) {
    %c0_i32 = arith.constant 0 : i32
    %c0_i32_0 = arith.constant 0 : i32
    return %arg0, %c0_i32 : i32, i32
  }
  func.func @transform_1(%arg0: i32) -> (i32, i32) {
    %c0_i32 = arith.constant 0 : i32
    %c0_i32_0 = arith.constant 0 : i32
    %c0_i32_1 = arith.constant 0 : i32
    return %c0_i32, %c0_i32_0 : i32, i32
  }
  func.func @transform_2(%arg0: i32) -> (i32, i32) {
    %c0_i32 = arith.constant 0 : i32
    %c0_i32_0 = arith.constant 0 : i32
    %c0_i32_1 = arith.constant 0 : i32
    return %c0_i32, %c0_i32_0 : i32, i32
  }
  func.func @transform_3(%arg0: i32) -> (i32, i32) {
    %c0_i32 = arith.constant 0 : i32
    %c0_i32_0 = arith.constant 0 : i32
    %c0_i32_1 = arith.constant 0 : i32
    return %c0_i32, %c0_i32_0 : i32, i32
  }
  func.func @transform_4(%arg0: i32) -> i32 {
    %c0_i32 = arith.constant 0 : i32
    %c0_i32_0 = arith.constant 0 : i32
    return %c0_i32 : i32
  }
  func.func @transform_5(%arg0: i32) -> (i32, i32) {
    %c0_i32 = arith.constant 0 : i32
    %c0_i32_0 = arith.constant 0 : i32
    return %arg0, %c0_i32 : i32, i32
  }
}

</mosaic_0001>

<llo_original>
// kernel: graph_state_forward.1
$region0: #{graph_state_forward.1}
  #allocation0 [shape = 'u32[]', space=smem, size = 0x4, offset = 0x4, fixed_abs, tag = 'smem constant byte address 0x4 - core index']
  #allocation1 [shape = 'u32[72,128]{1,0:T(1,128)}', space=vmem, size = 0x9000, scoped, tag = 'internal scratch']
  #allocation2 [shape = 'f32[1]{0:T(128)S(6)}', space=smem, size = 0x200, scoped, tag = 'scoped memory for graph_state_forward.1']
  %s0 = inlined_call_operand.vmem [shape: f32[16,48], index: 0, kind: input, shape index: {}]
  %s1 = inlined_call_operand.vmem [shape: bf16[48,64], index: 1, kind: input, shape index: {}]
  %s2 = inlined_call_operand.vmem [shape: f32[1,64], index: 2, kind: input, shape index: {}]
  %s3 = inlined_call_operand.vmem [shape: f32[1,32], index: 3, kind: input, shape index: {}]
  %s4 = inlined_call_operand.<no memory space> [shape: f32[1], index: 4, kind: input, shape index: {}]
  %s5 = inlined_call_operand.vmem [shape: f32[16,1], index: 5, kind: output, shape index: {}]
  %s6 = sld [smem:[#allocation0]]
  $region30: #{graph_state_forward.1} parent=0
    _
  %s8 = ssub.s32 1, %s6
  %s9 = scalar_select 0, %s8, %s6
  %10 = sst [smem:[#allocation2]] %s4
  // Predicated region
  $region2: #{graph_state_forward.1} parent=0 // pred_check
    _
  $region3: #{graph_state_forward.1} parent=0 // pred_check_branch
    %12 = sbr.rel (0) target = $region5
  $region4: #{graph_state_forward.1} parent=0 // pred_region
    _
  $region5: #{graph_state_forward.1} parent=0 // pred_fallthru
    _
  // Predicated region
  $region6: #{graph_state_forward.1} parent=0 // pred_check
    _
  $region7: #{graph_state_forward.1} parent=0 // pred_check_branch
    %14 = sbr.rel (0) target = $region9
  $region8: #{graph_state_forward.1} parent=0 // pred_region
    _
  $region9: #{graph_state_forward.1} parent=0 // pred_fallthru
    _
  // Predicated region
  $region10: #{graph_state_forward.1} parent=0 // pred_check
    _
  $region11: #{graph_state_forward.1} parent=0 // pred_check_branch
    %16 = sbr.rel (0) target = $region13
  $region12: #{graph_state_forward.1} parent=0 // pred_region
    _
  $region13: #{graph_state_forward.1} parent=0 // pred_fallthru
    _
  // Predicated region
  $region14: #{graph_state_forward.1} parent=0 // pred_check
    _
  $region15: #{graph_state_forward.1} parent=0 // pred_check_branch
    %18 = sbr.rel (0) target = $region17
  $region16: #{graph_state_forward.1} parent=0 // pred_region
    _
  $region17: #{graph_state_forward.1} parent=0 // pred_fallthru
    _
  // Predicated region
  $region18: #{graph_state_forward.1} parent=0 // pred_check
    _
  $region19: #{graph_state_forward.1} parent=0 // pred_check_branch
    %20 = sbr.rel (0) target = $region21
  $region20: #{graph_state_forward.1} parent=0 // pred_region
    _
  $region21: #{graph_state_forward.1} parent=0 // pred_fallthru
    _
  %v22 = vld [vmem:[%s0] sm:$0xff]
  %v23 = vld [vmem:[%s0 + $0x8] sm:$0xff]
  %v24 = vpack.c.bf16 %v23, %v22
  %v25 = vld [vmem:[%s1] sm:$0xf]
  %v26 = vld [vmem:[%s1 + $0x4] sm:$0xf]
  %v27 = vld [vmem:[%s1 + $0x8] sm:$0xf]
  %v28 = vld [vmem:[%s1 + $0xc] sm:$0xf]
  %v29 = vld [vmem:[%s1 + $0x10] sm:$0xf]
  %v30 = vld [vmem:[%s1 + $0x14] sm:$0xf]
  %v31 = vld [vmem:[%s2] sm:$0x1]
  %v33 = vperm.slane %v31, 0
  %v41 = vunpack.c.l.b16 %v25
  %v42 = vunpack.c.l.b16 %v26
  %v43 = vunpack.c.l.b16 %v27
  %v44 = vunpack.c.l.b16 %v28
  %v45 = vunpack.c.l.b16 %v29
  %v46 = vunpack.c.l.b16 %v30
  %v47 = vpack.c.b16 %v42, %v41
  %v48 = vpack.c.b16 %v44, %v43
  %v49 = vpack.c.b16 %v46, %v45
  %vm53 = vcmask 392192
  %v55 = vsel %vm53, %v24, 0
  %57 = vmatpush.bf16.msra.mxu0 0
  %58 = vmatpush.bf16.msra.mxu0 0
  %59 = vmatpush.bf16.msra.mxu0 0
  %60 = vmatpush.bf16.msra.mxu0 0
  %61 = vmatpush.bf16.msra.mxu0 0
  %62 = vmatpush.bf16.msra.mxu0 %v49
  %63 = vmatpush.bf16.msra.mxu0 %v48
  %64 = vmatpush.bf16.msra.mxu0 %v47
  %65 = vmatmul.bf16.gmra.mxu0 %v55
  %v66 = vpop.f32.mrf.mxu0
  %v67 = vadd.f32 %v33, %v66
  %v68 = vpop.f32.mrf.mxu0
  %v69 = vadd.f32 %v33, %v68
  %70 = vdwg.mxu0
  %v71 = vtanh.pop %v67
  %v72 = vtanh.pop %v69
  %v73 = vld [vmem:[%s3] sm:$0x1]
  %v75 = vperm.slane %v73, 0
  %v77 = vmul.f32 %v71, %v75
  %v78 = vmul.f32 %v72, %v75
  %vm79 = vcmask 261120
  %v80 = vsel %vm79, %v77, 0.0
  %81 = vadd.xlane.f32.xlu0 %v80
  %v82 = vpop.xlane.xlu0 %81
  %v83 = vsel %vm79, %v78, 0.0
  %84 = vadd.xlane.f32.xlu0 %v83
  %v85 = vpop.xlane.xlu0 %84
  %s86 = sld [smem:[#allocation2]]
  %v87 = vstv %s86
  %v88 = vadd.f32 %v82, %v87
  %v89 = vadd.f32 %v85, %v87
  %92 = vrot.lane.b32.xlu0 %v71, 96
  %v93 = vpop.permute.xlu0 %92
  %94 = vrot.lane.b32.xlu0 %v72, 96
  %v95 = vpop.permute.xlu0 %94
  %v98 = vsel %vm79, %v93, 0.0
  %99 = vadd.xlane.f32.xlu0 %v98
  %v100 = vpop.xlane.xlu0 %99
  %v101 = vsel %vm79, %v95, 0.0
  %102 = vadd.xlane.f32.xlu0 %v101
  %v103 = vpop.xlane.xlu0 %102
  %v104 = vmul.f32 %v88, %v100
  %v105 = vmul.f32 %v89, %v103
  %vm106 = vcmask 7168
  %107 = vst.msk [vmem:[%s5] sm:$0xff] %vm106, %v104
  %108 = vst.msk [vmem:[%s5 + $0x8] sm:$0xff] %vm106, %v105
  // Predicated region
  $region22: #{graph_state_forward.1} parent=0 // pred_check
    _
  $region23: #{graph_state_forward.1} parent=0 // pred_check_branch
    %110 = sbr.rel (0) target = $region25
  $region24: #{graph_state_forward.1} parent=0 // pred_region
    _
  $region25: #{graph_state_forward.1} parent=0 // pred_fallthru
    _
  // Predicated region
  $region26: #{graph_state_forward.1} parent=0 // pred_check
    _
  $region27: #{graph_state_forward.1} parent=0 // pred_check_branch
    %112 = sbr.rel (0) target = $region29
  $region28: #{graph_state_forward.1} parent=0 // pred_region
    _
  $region29: #{graph_state_forward.1} parent=0 // pred_fallthru
    _

</llo_original>
